<compile_context>
chip_gen: v6e
topology: v6e:2x2x1
jax: 0.10.0
libtpu: 0.0.40
codegen_flags: <defaults>
</compile_context>

<pallas_src>
import numpy as np
import jax
import jax.numpy as jnp
from jax.experimental import pallas as pl
from jax.experimental.pallas import tpu as pltpu

LANE = 128
SUBLANE = 8


# ----------------------------------------------------------------------------
# Pallas kernel: per-tile partial of sum((recon - x)^2)
# ----------------------------------------------------------------------------
def vae_recon_kernel(recon_ref, x_ref, out_ref):
    """recon_ref/x_ref: (t, 128) tiles in native dtype; out_ref: (8, 128) f32 partials."""
    d = recon_ref[...].astype(jnp.float32) - x_ref[...].astype(jnp.float32)
    dd = d * d
    t = dd.shape[0]
    # Fold t rows into one (8,128) vreg of per-(sublane,lane) partial sums.
    # The reshape only splits the sublane axis (keeps (8,128) vreg tiling), the axis-0
    # sum is plain VALU adds, and the store is a full unmasked (8,128) vreg store.
    out_ref[...] = jnp.sum(dd.reshape(t // SUBLANE, SUBLANE, LANE), axis=0)


# ----------------------------------------------------------------------------
# Wrapper helpers
# ----------------------------------------------------------------------------
def _round_up(a, b):
    return ((a + b - 1) // b) * b


def _target_block_rows(itemsize):
    """Rows per block: ~2 MiB/input (4 MiB on the 64-MiB-VMEM generation, i.e. v7x)."""
    target_bytes = 2 << 20
    try:
        info = pltpu.get_tpu_info()
        vmem = getattr(info, "vmem_capacity_bytes", None)
        if vmem is not None and vmem <= (64 << 20):
            target_bytes = 4 << 20  # v7x: bigger steps to amortize fixed DMA overhead
    except Exception:
        pass
    rows = (target_bytes // (LANE * max(1, itemsize))) // SUBLANE * SUBLANE
    return max(SUBLANE, rows)


def _pick_tiling(n, itemsize):
    """Return (rows_total, block_rows, num_tiles) with rows_total % block_rows == 0."""
    rows = max(1, -(-n // LANE))
    rows_p = _round_up(rows, SUBLANE)
    target = _target_block_rows(itemsize)
    if rows_p <= target:
        return rows_p, rows_p, 1                      # single full-extent block
    # Prefer a block size that divides rows_p exactly (avoids any extra pad copy).
    m = rows_p // SUBLANE
    t = None
    for d in range(target // SUBLANE, 0, -1):
        if m % d == 0:
            t = d * SUBLANE
            break
    if t is not None and t >= 256:
        return rows_p, t, rows_p // t
    # Awkward factorization: pad up to a multiple of the target block instead of
    # accepting tiny blocks (rare; only then do we pay an extra copy).
    rows_pad = _round_up(rows_p, target)
    return rows_pad, target, rows_pad // target


def _as_lane_matrix(a, rows_needed):
    """(rows_needed, 128) view of a's flattening in its NATIVE dtype.
    Free (pure reshape) when a.size == rows_needed*128; otherwise zero-padded
    (exact for the squared-error sum: (0-0)^2 = 0)."""
    flat = jnp.ravel(a)
    pad = rows_needed * LANE - flat.shape[0]
    if pad:
        flat = jnp.pad(flat, (0, pad))
    return flat.reshape(rows_needed, LANE)


# ----------------------------------------------------------------------------
# Public entry point
# ----------------------------------------------------------------------------
def vae_loss(recon_x, x, mu, logvar):
    """Scalar VAE loss: F.mse_loss(recon_x, x, reduction='sum') + KL."""
    assert recon_x.shape == x.shape
    n = int(np.prod(recon_x.shape)) if recon_x.ndim else 1
    itemsize = max(jnp.dtype(recon_x.dtype).itemsize, jnp.dtype(x.dtype).itemsize)

    rows_total, t, num_tiles = _pick_tiling(n, itemsize)
    r_mat = _as_lane_matrix(recon_x, rows_total)
    x_mat = _as_lane_matrix(x, rows_total)

    # VMEM budget: 2 input streams x 2 pipeline buffers x block, plus small margin.
    block_bytes = t * LANE * itemsize
    vmem_need = 4 * block_bytes + (2 << 20)
    vmem_limit = int(min(max(vmem_need, 32 << 20), 48 << 20))   # never v7x's full 64 MiB

    partials = pl.pallas_call(
        vae_recon_kernel,
        out_shape=jax.ShapeDtypeStruct((num_tiles * SUBLANE, LANE), jnp.float32),
        grid_spec=pltpu.PrefetchScalarGridSpec(
            num_scalar_prefetch=0,
            grid=(num_tiles,),
            in_specs=[
                pl.BlockSpec((t, LANE), lambda i: (i, 0)),   # recon tile
                pl.BlockSpec((t, LANE), lambda i: (i, 0)),   # x tile
            ],
            out_specs=pl.BlockSpec((SUBLANE, LANE), lambda i: (i, 0)),
        ),
        compiler_params=pltpu.CompilerParams(
            dimension_semantics=("parallel",),
            vmem_limit_bytes=vmem_limit,
        ),
        cost_estimate=pl.CostEstimate(
            flops=3 * n,
            transcendentals=0,
            bytes_accessed=n * (jnp.dtype(recon_x.dtype).itemsize
                                + jnp.dtype(x.dtype).itemsize)
                           + num_tiles * SUBLANE * LANE * 4,
        ),
    )(r_mat, x_mat)

    recon_loss = jnp.sum(partials)

    # KL term on the tiny latent tensors: plain JAX (keeps the kernel a pure
    # two-stream reduction; removes two DMAs + resident buffers from the pipeline).
    mu_f = mu.astype(jnp.float32)
    lv_f = logvar.astype(jnp.float32)
    kl = -0.5 * jnp.sum(1.0 + lv_f - mu_f * mu_f - jnp.exp(lv_f))

    return recon_loss + kl


# ----------------------------------------------------------------------------
if __name__ == "__main__":
    key = jax.random.PRNGKey(0)
    k1, k2, k3, k4 = jax.random.split(key, 4)

    recon_x = jax.random.normal(k1, (2, 4, 16, 16), jnp.float32)
    x = jax.random.normal(k2, (2, 4, 16, 16), jnp.float32)
    mu = jax.random.normal(k3, (2, 32), jnp.float32)
    logvar = 0.5 * jax.random.normal(k4, (2, 32), jnp.float32)

    loss = jax.block_until_ready(vae_loss(recon_x, x, mu, logvar))

    # pure-JAX reference (same math, no Pallas)
    ref = (jnp.sum((recon_x - x) ** 2)
           - 0.5 * jnp.sum(1.0 + logvar - mu ** 2 - jnp.exp(logvar)))
    ref = jax.block_until_ready(ref)

    np.testing.assert_allclose(np.asarray(loss), np.asarray(ref), rtol=1e-5, atol=1e-3)
    print("KERNEL_OK")
</pallas_src>

<mosaic_0001>
module attributes {stable_mosaic.version = 11 : i64} {
  func.func @vae_recon_kernel(%arg0: i32, %arg1: memref<16x128xf32, #tpu.memory_space<vmem>>, %arg2: memref<16x128xf32, #tpu.memory_space<vmem>>, %arg3: memref<8x128xf32, #tpu.memory_space<vmem>>) attributes {dimension_semantics = [#tpu.dimension_semantics<parallel>], iteration_bounds = array<i64: 1>, scalar_prefetch = 0 : i64, scratch_operands = 0 : i64, tpu.core_type = #tpu.core_type<tc>, window_params = [{transform_indices = @transform_0, window_bounds = array<i64: 16, 128>}, {transform_indices = @transform_1, window_bounds = array<i64: 16, 128>}, {transform_indices = @transform_2, window_bounds = array<i64: 8, 128>}]} {
    %c0 = arith.constant 0 : index
    %c0_0 = arith.constant 0 : index
    %0 = vector.load %arg1[%c0, %c0_0] : memref<16x128xf32, #tpu.memory_space<vmem>>, vector<16x128xf32>
    %c0_1 = arith.constant 0 : index
    %c0_2 = arith.constant 0 : index
    %1 = vector.load %arg2[%c0_1, %c0_2] : memref<16x128xf32, #tpu.memory_space<vmem>>, vector<16x128xf32>
    %2 = arith.subf %0, %1 : vector<16x128xf32>
    %3 = arith.mulf %2, %2 : vector<16x128xf32>
    %4 = vector.shape_cast %3 : vector<16x128xf32> to vector<2x8x128xf32>
    %cst = arith.constant dense<0.000000e+00> : vector<8x128xf32>
    %5 = vector.multi_reduction <add>, %4, %cst [0] : vector<2x8x128xf32> to vector<8x128xf32>
    %c0_3 = arith.constant 0 : index
    %c0_4 = arith.constant 0 : index
    %6 = vector.load %arg3[%c0_3, %c0_4] : memref<8x128xf32, #tpu.memory_space<vmem>>, vector<8x128xf32>
    tpu.vector_store %arg3[%c0_3, %c0_4], %5 {strides = array<i32>} : memref<8x128xf32, #tpu.memory_space<vmem>>, vector<8x128xf32>,
    return
  }
  func.func @transform_0(%arg0: i32) -> (i32, i32) {
    %c0_i32 = arith.constant 0 : i32
    %c0_i32_0 = arith.constant 0 : i32
    return %arg0, %c0_i32 : i32, i32
  }
  func.func @transform_1(%arg0: i32) -> (i32, i32) {
    %c0_i32 = arith.constant 0 : i32
    %c0_i32_0 = arith.constant 0 : i32
    return %arg0, %c0_i32 : i32, i32
  }
  func.func @transform_2(%arg0: i32) -> (i32, i32) {
    %c0_i32 = arith.constant 0 : i32
    %c0_i32_0 = arith.constant 0 : i32
    return %arg0, %c0_i32 : i32, i32
  }
}

</mosaic_0001>

<llo_original>
// kernel: tpu_custom_call.1
$region0: #{tpu_custom_call.1}
  #allocation0 [shape = 'u32[]', space=smem, size = 0x4, offset = 0x4, fixed_abs, tag = 'smem constant byte address 0x4 - core index']
  #allocation1 [shape = 'u32[144,128]{1,0:T(1,128)}', space=vmem, size = 0x12000, scoped, tag = 'internal scratch']
  %s0 = inlined_call_operand.hbm [shape: f32[16,128], index: 0, kind: input, shape index: {}]
  %s1 = inlined_call_operand.hbm [shape: f32[16,128], index: 1, kind: input, shape index: {}]
  %s2 = inlined_call_operand.hbm [shape: f32[8,128], index: 2, kind: output, shape index: {}]
  %s3 = sld [smem:[#allocation0]]
  $region26: #{tpu_custom_call.1} parent=0
    _
  %s5 = ssub.s32 1, %s3
  %s6 = scalar_select 0, %s5, %s3
  $region1: #{tpu_custom_call.1} parent=0
    #allocation2 [shape = 'u8[8192]{0}', space=vmem, size = 0x2000, scoped, tag = 'input window, operand 0, single buffered']
    #allocation3 [shape = 's32[1]{0}', space=sflag, size = 0x4, scoped, tag = 'scoped memory for tpu_custom_call.1']
    #allocation4 [shape = 's32[1]{0}', space=sflag, size = 0x4, scoped, tag = 'scoped memory for tpu_custom_call.1']
    #allocation5 [shape = 'u8[8192]{0}', space=vmem, size = 0x2000, scoped, tag = 'input window, operand 1, single buffered']
    #allocation6 [shape = 's32[1]{0}', space=sflag, size = 0x4, scoped, tag = 'scoped memory for tpu_custom_call.1']
    #allocation7 [shape = 'u8[4096]{0}', space=vmem, size = 0x1000, scoped, tag = 'output window, operand 0, single buffered']
    %7 = vsyncpa [#allocation3], 0
    %8 = vsyncpa [#allocation6], 0
    %9 = vsyncpa [#allocation4], 0
    // Predicated region
    $region2: #{tpu_custom_call.1} parent=1 // pred_check
      _
    $region3: #{tpu_custom_call.1} parent=1 // pred_check_branch
      %11 = sbr.rel (0) target = $region5
    $region4: #{tpu_custom_call.1} parent=1 // pred_region
      %s13 = ssub.s32 256, 256
      %14 = vsyncadd [#allocation3], %s13
      %s15 = sshll.u32 [#allocation2], 4
      %s16 = int_to_ptr.vmem [resolvable:$true] %s15
      %21 = dma.hbm_to_vmem [thread:$0]  %s0, 256, %s16, [#allocation3], 128, 128, 8
    $region5: #{tpu_custom_call.1} parent=1 // pred_fallthru
      _
    // Predicated region
    $region6: #{tpu_custom_call.1} parent=1 // pred_check
      _
    $region7: #{tpu_custom_call.1} parent=1 // pred_check_branch
      %23 = sbr.rel (0) target = $region9
    $region8: #{tpu_custom_call.1} parent=1 // pred_region
      %s25 = ssub.s32 256, 256
      %26 = vsyncadd [#allocation6], %s25
      %s27 = sshll.u32 [#allocation5], 4
      %s28 = int_to_ptr.vmem [resolvable:$true] %s27
      %33 = dma.hbm_to_vmem [thread:$0]  %s1, 256, %s28, [#allocation6], 128, 128, 8
    $region9: #{tpu_custom_call.1} parent=1 // pred_fallthru
      _
    // Predicated region
    $region10: #{tpu_custom_call.1} parent=1 // pred_check
      _
    $region11: #{tpu_custom_call.1} parent=1 // pred_check_branch
      %35 = sbr.rel (0) target = $region13
    $region12: #{tpu_custom_call.1} parent=1 // pred_region
      %36 = dma.done [#allocation3], 256
    $region13: #{tpu_custom_call.1} parent=1 // pred_fallthru
      _
    // Predicated region
    $region14: #{tpu_custom_call.1} parent=1 // pred_check
      _
    $region15: #{tpu_custom_call.1} parent=1 // pred_check_branch
      %38 = sbr.rel (0) target = $region17
    $region16: #{tpu_custom_call.1} parent=1 // pred_region
      %39 = dma.done [#allocation6], 256
    $region17: #{tpu_custom_call.1} parent=1 // pred_fallthru
      _
    %v40 = vld [vmem:[#allocation2] sm:$0xff]
    %v41 = vld [vmem:[#allocation2 + $0x8] sm:$0xff]
    %v42 = vld [vmem:[#allocation5] sm:$0xff]
    %v43 = vld [vmem:[#allocation5 + $0x8] sm:$0xff]
    %v44 = vsub.f32 %v40, %v42
    %v45 = vsub.f32 %v41, %v43
    %v46 = vmul.f32 %v44, %v44
    %v47 = vmul.f32 %v45, %v45
    %v48 = vadd.f32 %v46, %v47
    %49 = vst [vmem:[#allocation7] sm:$0xff] %v48
    // Predicated region
    $region18: #{tpu_custom_call.1} parent=1 // pred_check
      _
    $region19: #{tpu_custom_call.1} parent=1 // pred_check_branch
      %51 = sbr.rel (0) target = $region21
    $region20: #{tpu_custom_call.1} parent=1 // pred_region
      %s53 = ssub.s32 128, 128
      %54 = vsyncadd [#allocation4], %s53
      %s56 = sshll.u32 [#allocation7], 4
      %s57 = int_to_ptr.vmem [resolvable:$true] %s56
      %59 = dma.vmem_to_hbm [thread:$0]  %s57, 128, %s2, [#allocation4]
    $region21: #{tpu_custom_call.1} parent=1 // pred_fallthru
      _
    // Predicated region
    $region22: #{tpu_custom_call.1} parent=1 // pred_check
      _
    $region23: #{tpu_custom_call.1} parent=1 // pred_check_branch
      %61 = sbr.rel (0) target = $region25
    $region24: #{tpu_custom_call.1} parent=1 // pred_region
      %62 = dma.done [#allocation4], 128
    $region25: #{tpu_custom_call.1} parent=1 // pred_fallthru
      _
    %63 = vsyncpa [#allocation3], 1
    %64 = vsyncpa [#allocation6], 1
    %65 = vsyncpa [#allocation4], 1

</llo_original>
